<compile_context>
chip_gen: v7x
topology: tpu7x:2x2x1
jax: 0.10.0
libtpu: 0.0.40
codegen_flags: <defaults>
</compile_context>

<pallas_src>
import jax
import jax.numpy as jnp
from jax.experimental import pallas as pl
from jax.experimental.pallas import tpu as pltpu


def _make_gru_decoder_kernel(num_layers):
    """Kernel refs: [x, hn, 5 refs per layer..., w_lin, b_lin, out, hn_out].

    Per-layer refs: w_r (D+H,H) bf16, w_z (D+H,H) bf16, w_in (D,H) bf16,
    w_hn (H,H) bf16, b (4,H) f32 with rows [b_r, b_z, b_in, b_hn].
    """
    n_layer_refs = 5 * num_layers

    def kernel(*refs):
        x_ref = refs[0]                        # (B, D0)           f32
        hn_ref = refs[1]                       # (L, B, H)          f32
        layer_refs = refs[2:2 + n_layer_refs]
        w_lin_ref = refs[2 + n_layer_refs]     # (H, 1)             bf16
        b_lin_ref = refs[3 + n_layer_refs]     # (1, 1)             f32
        out_ref = refs[4 + n_layer_refs]       # (B, 1)             f32
        hn_out_ref = refs[5 + n_layer_refs]    # (L, B, H)          f32 (aliases hn)

        h_in = x_ref[...].astype(jnp.float32)  # layer input (B, D_l), f32

        for l in range(num_layers):            # unrolled at trace time
            w_r, w_z, w_in, w_hn, b = layer_refs[5 * l: 5 * l + 5]

            h_prev = hn_ref[l].astype(jnp.float32)          # (B, H) f32 (for blend)
            h_prev_bf = h_prev.astype(jnp.bfloat16)         # bf16 matmul operand
            h_in_bf = h_in.astype(jnp.bfloat16)

            # K-stacked r/z gates: one concatenated operand, one matmul each.
            xh = jnp.concatenate([h_in_bf, h_prev_bf], axis=-1)   # (B, D+H) bf16
            r = jax.nn.sigmoid(
                jnp.dot(xh, w_r[...], preferred_element_type=jnp.float32)
                + b[0:1, :])
            z = jax.nn.sigmoid(
                jnp.dot(xh, w_z[...], preferred_element_type=jnp.float32)
                + b[1:2, :])

            # candidate: n = tanh(W_in x + b_in + r * (W_hn h + b_hn))
            hn_proj = (jnp.dot(h_prev_bf, w_hn[...],
                               preferred_element_type=jnp.float32) + b[3:4, :])
            n = jnp.tanh(
                jnp.dot(h_in_bf, w_in[...], preferred_element_type=jnp.float32)
                + b[2:3, :] + r * hn_proj)

            # blend in f32 (matches nn.GRU numerics closely)
            h_new = (1.0 - z) * n + z * h_prev
            hn_out_ref[l] = h_new.astype(hn_out_ref.dtype)
            h_in = h_new                                    # feed next layer

        # final Linear(H, 1) on the last layer's hidden state
        out_ref[...] = (
            jnp.dot(h_in.astype(jnp.bfloat16), w_lin_ref[...],
                    preferred_element_type=jnp.float32)
            + b_lin_ref[...]).astype(out_ref.dtype)

    return kernel


def init_gru_decoder_params(key, input_size, hidden_size, num_layers):
    """PyTorch-style uniform(-1/sqrt(H), 1/sqrt(H)) init, PyTorch layouts.

    Returns (gru_params, (w_lin, b_lin)) with per-layer
    (w_ih (3H, D_l), w_hh (3H, H), b_ih (3H,), b_hh (3H,)), gate order r,z,n.
    """
    gru_params = []
    scale = 1.0 / (hidden_size ** 0.5)
    for layer in range(num_layers):
        d_in = input_size if layer == 0 else hidden_size
        key, k1, k2, k3, k4 = jax.random.split(key, 5)
        w_ih = jax.random.uniform(k1, (3 * hidden_size, d_in), jnp.float32, -scale, scale)
        w_hh = jax.random.uniform(k2, (3 * hidden_size, hidden_size), jnp.float32, -scale, scale)
        b_ih = jax.random.uniform(k3, (3 * hidden_size,), jnp.float32, -scale, scale)
        b_hh = jax.random.uniform(k4, (3 * hidden_size,), jnp.float32, -scale, scale)
        gru_params.append((w_ih, w_hh, b_ih, b_hh))
    key, kw, kb = jax.random.split(key, 3)
    w_lin = jax.random.uniform(kw, (1, hidden_size), jnp.float32, -scale, scale)
    b_lin = jax.random.uniform(kb, (1,), jnp.float32, -scale, scale)
    return gru_params, (w_lin, b_lin)


def prepare_gru_decoder_weights(gru_params, lin_params, weight_dtype=jnp.bfloat16):
    """ONE-TIME host-side prep (hoisted out of the per-step jitted path).

    Per layer: W_r=[W_ir;W_hr] (D+H,H), W_z=[W_iz;W_hz] (D+H,H), W_in (D,H),
    W_hn (H,H) in `weight_dtype`; biases packed as (4,H) f32 rows
    [b_ir+b_hr, b_iz+b_hz, b_in, b_hn] (b_hn kept separate -- it sits inside
    the reset-gated term, exactly as nn.GRU does).
    """
    H = gru_params[0][1].shape[1]
    flat = []
    for (w_ih, w_hh, b_ih, b_hh) in gru_params:
        w_ir, w_iz, w_in = (w_ih[0 * H:1 * H].T, w_ih[1 * H:2 * H].T, w_ih[2 * H:3 * H].T)
        w_hr, w_hz, w_hn = (w_hh[0 * H:1 * H].T, w_hh[1 * H:2 * H].T, w_hh[2 * H:3 * H].T)
        w_r = jnp.concatenate([w_ir, w_hr], axis=0).astype(weight_dtype)   # (D+H, H)
        w_z = jnp.concatenate([w_iz, w_hz], axis=0).astype(weight_dtype)   # (D+H, H)
        b = jnp.stack([
            b_ih[0 * H:1 * H] + b_hh[0 * H:1 * H],    # b_r
            b_ih[1 * H:2 * H] + b_hh[1 * H:2 * H],    # b_z
            b_ih[2 * H:3 * H],                        # b_in
            b_hh[2 * H:3 * H],                        # b_hn
        ], axis=0).astype(jnp.float32)                # (4, H)
        flat += [w_r, w_z, w_in.astype(weight_dtype), w_hn.astype(weight_dtype), b]
    w_lin, b_lin = lin_params
    flat += [w_lin.T.astype(weight_dtype),            # (H, 1)
             b_lin.reshape(1, 1).astype(jnp.float32)] # (1, 1)
    return tuple(flat)


def _padded_vmem_bytes(shape, dtype):
    """Padded (sublane, 128-lane) VMEM footprint of one operand."""
    itemsize = jnp.dtype(dtype).itemsize
    sub = 8 * max(1, 4 // itemsize)        # f32 -> 8 sublanes, bf16 -> 16
    shape = tuple(shape)
    if len(shape) == 0:
        shape = (1, 1)
    elif len(shape) == 1:
        shape = (1,) + shape
    lead = 1
    for d in shape[:-2]:
        lead *= d
    rows = -(-shape[-2] // sub) * sub
    cols = -(-shape[-1] // 128) * 128
    return lead * rows * cols * itemsize


def gru_decoder_forward(x, hn, flat_weights):
    """Equivalent of GRU_decoder.forward: x (B, input_size), hn (L, B, H)
    -> (out (B, 1, 1), hn_new (L, B, H)).  hn is updated in place (aliased).
    # TODO(synk): nn.GRU inter-layer dropout is train-only/stochastic; it is a
    # no-op in this deterministic forward pass.
    """
    B = x.shape[0]
    num_layers, _, H = hn.shape

    out_shapes = (
        jax.ShapeDtypeStruct((B, 1), jnp.float32),
        jax.ShapeDtypeStruct((num_layers, B, H), jnp.float32),
    )
    operands = (x, hn) + tuple(flat_weights)

    # Size the VMEM budget from the actual padded footprint (+ headroom) so we
    # never reserve half of v7x's 64 MiB for a sub-MiB kernel.
    vmem_bytes = sum(_padded_vmem_bytes(a.shape, a.dtype) for a in operands)
    vmem_bytes += sum(_padded_vmem_bytes(s.shape, s.dtype) for s in out_shapes)
    vmem_limit = int(2 * vmem_bytes + (1 << 20))

    vmem = pl.BlockSpec(memory_space=pltpu.MemorySpace.VMEM)
    out, hn_new = pl.pallas_call(
        _make_gru_decoder_kernel(num_layers),
        out_shape=out_shapes,
        in_specs=[vmem] * len(operands),
        out_specs=(vmem, vmem),
        input_output_aliases={1: 1},   # hn (input 1) aliases hn_new (output 1)
        compiler_params=pltpu.CompilerParams(vmem_limit_bytes=vmem_limit),
    )(*operands)
    return out.reshape(B, 1, 1), hn_new


def _gru_decoder_ref(x, hn, gru_params, lin_params):
    """Pure-JAX f32 reference implementing torch.nn.GRU (gate order r,z,n) + Linear."""
    H = gru_params[0][1].shape[1]
    h_in = x
    hs = []
    for l, (w_ih, w_hh, b_ih, b_hh) in enumerate(gru_params):
        h_prev = hn[l]
        gi = h_in @ w_ih.T + b_ih
        gh = h_prev @ w_hh.T + b_hh
        r = jax.nn.sigmoid(gi[:, 0 * H:1 * H] + gh[:, 0 * H:1 * H])
        z = jax.nn.sigmoid(gi[:, 1 * H:2 * H] + gh[:, 1 * H:2 * H])
        n = jnp.tanh(gi[:, 2 * H:3 * H] + r * gh[:, 2 * H:3 * H])
        h_new = (1.0 - z) * n + z * h_prev
        hs.append(h_new)
        h_in = h_new
    w_lin, b_lin = lin_params
    out = h_in @ w_lin.T + b_lin
    return out.reshape(x.shape[0], 1, 1), jnp.stack(hs, axis=0)


if __name__ == "__main__":
    # GRU_decoder(input_size=16, hidden_size=32, num_layers=2, dropout=0.0)
    # forward(x (B=2, 16), hn (2, B=2, 32)) -> out (2, 1, 1), hn (2, 2, 32)
    B, INPUT_SIZE, HIDDEN_SIZE, NUM_LAYERS = 2, 16, 32, 2

    key = jax.random.PRNGKey(0)
    kx, kh, kp = jax.random.split(key, 3)
    x = jax.random.normal(kx, (B, INPUT_SIZE), jnp.float32)
    hn = jax.random.normal(kh, (NUM_LAYERS, B, HIDDEN_SIZE), jnp.float32)
    gru_params, lin_params = init_gru_decoder_params(kp, INPUT_SIZE, HIDDEN_SIZE, NUM_LAYERS)

    # One-time weight prep (outside the per-step jitted path).
    flat_weights = prepare_gru_decoder_weights(gru_params, lin_params)
    flat_weights = jax.block_until_ready(flat_weights)

    fwd = jax.jit(gru_decoder_forward)
    out, hn_new = fwd(x, hn, flat_weights)
    jax.block_until_ready((out, hn_new))

    # sanity check against pure-JAX f32 reference (bf16 weights -> ~1e-2 tol)
    out_r, hn_r = _gru_decoder_ref(x, hn, gru_params, lin_params)
    assert out.shape == (B, 1, 1)
    assert hn_new.shape == (NUM_LAYERS, B, HIDDEN_SIZE)
    assert jnp.allclose(out, out_r, atol=2e-2, rtol=2e-2)
    assert jnp.allclose(hn_new, hn_r, atol=2e-2, rtol=2e-2)

    print("KERNEL_OK")
</pallas_src>

<mosaic_0001>
module attributes {stable_mosaic.version = 11 : i64} {
  func.func @kernel(%arg0: memref<2x16xf32, #tpu.memory_space<vmem>>, %arg1: memref<2x2x32xf32, #tpu.memory_space<vmem>>, %arg2: memref<48x32xbf16, #tpu.memory_space<vmem>>, %arg3: memref<48x32xbf16, #tpu.memory_space<vmem>>, %arg4: memref<16x32xbf16, #tpu.memory_space<vmem>>, %arg5: memref<32x32xbf16, #tpu.memory_space<vmem>>, %arg6: memref<4x32xf32, #tpu.memory_space<vmem>>, %arg7: memref<64x32xbf16, #tpu.memory_space<vmem>>, %arg8: memref<64x32xbf16, #tpu.memory_space<vmem>>, %arg9: memref<32x32xbf16, #tpu.memory_space<vmem>>, %arg10: memref<32x32xbf16, #tpu.memory_space<vmem>>, %arg11: memref<4x32xf32, #tpu.memory_space<vmem>>, %arg12: memref<32x1xbf16, #tpu.memory_space<vmem>>, %arg13: memref<1x1xf32, #tpu.memory_space<vmem>>, %arg14: memref<2x1xf32, #tpu.memory_space<vmem>>, %arg15: memref<2x2x32xf32, #tpu.memory_space<vmem>>) attributes {dimension_semantics = [], scalar_prefetch = 0 : i64, scratch_operands = 0 : i64, tpu.core_type = #tpu.core_type<tc>} {
    %c0 = arith.constant 0 : index
    %c0_0 = arith.constant 0 : index
    %0 = vector.load %arg0[%c0, %c0_0] : memref<2x16xf32, #tpu.memory_space<vmem>>, vector<2x16xf32>
    %c0_1 = arith.constant 0 : index
    %c0_2 = arith.constant 0 : index
    %c0_3 = arith.constant 0 : index
    %1 = vector.load %arg1[%c0_1, %c0_2, %c0_3] : memref<2x2x32xf32, #tpu.memory_space<vmem>>, vector<1x2x32xf32>
    %2 = vector.shape_cast %1 : vector<1x2x32xf32> to vector<2x32xf32>
    %3 = arith.truncf %2 : vector<2x32xf32> to vector<2x32xbf16>
    %4 = arith.truncf %0 : vector<2x16xf32> to vector<2x16xbf16>
    %5 = tpu.concatenate %4, %3 in 1 : vector<2x16xbf16>, vector<2x32xbf16> -> vector<2x48xbf16>
    %c0_4 = arith.constant 0 : index
    %c0_5 = arith.constant 0 : index
    %6 = vector.load %arg2[%c0_4, %c0_5] : memref<48x32xbf16, #tpu.memory_space<vmem>>, vector<48x32xbf16>
    %cst = arith.constant dense<0.000000e+00> : vector<2x32xf32>
    %7 = tpu.matmul %5, %6, %cst {dimension_numbers = #tpu.dot_dimension_numbers<[1], [0], [0], [1], [0, 0, 1, 1], [], []>} : vector<2x48xbf16>, vector<48x32xbf16>, vector<2x32xf32> -> vector<2x32xf32>
    %c0_6 = arith.constant 0 : index
    %c0_7 = arith.constant 0 : index
    %8 = vector.load %arg6[%c0_6, %c0_7] : memref<4x32xf32, #tpu.memory_space<vmem>>, vector<1x32xf32>
    %9 = vector.broadcast %8 : vector<1x32xf32> to vector<2x32xf32>
    %10 = arith.addf %7, %9 : vector<2x32xf32>
    %11 = arith.negf %10 : vector<2x32xf32>
    %12 = math.exp %11 : vector<2x32xf32>
    %cst_8 = arith.constant 1.000000e+00 : f32
    %13 = vector.broadcast %cst_8 : f32 to vector<2x32xf32>
    %14 = arith.addf %13, %12 : vector<2x32xf32>
    %15 = arith.divf %13, %14 : vector<2x32xf32>
    %c0_9 = arith.constant 0 : index
    %c0_10 = arith.constant 0 : index
    %16 = vector.load %arg3[%c0_9, %c0_10] : memref<48x32xbf16, #tpu.memory_space<vmem>>, vector<48x32xbf16>
    %cst_11 = arith.constant dense<0.000000e+00> : vector<2x32xf32>
    %17 = tpu.matmul %5, %16, %cst_11 {dimension_numbers = #tpu.dot_dimension_numbers<[1], [0], [0], [1], [0, 0, 1, 1], [], []>} : vector<2x48xbf16>, vector<48x32xbf16>, vector<2x32xf32> -> vector<2x32xf32>
    %c1 = arith.constant 1 : index
    %c0_12 = arith.constant 0 : index
    %18 = vector.load %arg6[%c1, %c0_12] : memref<4x32xf32, #tpu.memory_space<vmem>>, vector<1x32xf32>
    %19 = vector.broadcast %18 : vector<1x32xf32> to vector<2x32xf32>
    %20 = arith.addf %17, %19 : vector<2x32xf32>
    %21 = arith.negf %20 : vector<2x32xf32>
    %22 = math.exp %21 : vector<2x32xf32>
    %cst_13 = arith.constant 1.000000e+00 : f32
    %23 = vector.broadcast %cst_13 : f32 to vector<2x32xf32>
    %24 = arith.addf %23, %22 : vector<2x32xf32>
    %25 = arith.divf %23, %24 : vector<2x32xf32>
    %c0_14 = arith.constant 0 : index
    %c0_15 = arith.constant 0 : index
    %26 = vector.load %arg5[%c0_14, %c0_15] : memref<32x32xbf16, #tpu.memory_space<vmem>>, vector<32x32xbf16>
    %cst_16 = arith.constant dense<0.000000e+00> : vector<2x32xf32>
    %27 = tpu.matmul %3, %26, %cst_16 {dimension_numbers = #tpu.dot_dimension_numbers<[1], [0], [0], [1], [0, 0, 1, 1], [], []>} : vector<2x32xbf16>, vector<32x32xbf16>, vector<2x32xf32> -> vector<2x32xf32>
    %c3 = arith.constant 3 : index
    %c0_17 = arith.constant 0 : index
    %28 = vector.load %arg6[%c3, %c0_17] : memref<4x32xf32, #tpu.memory_space<vmem>>, vector<1x32xf32>
    %29 = vector.broadcast %28 : vector<1x32xf32> to vector<2x32xf32>
    %30 = arith.addf %27, %29 : vector<2x32xf32>
    %c0_18 = arith.constant 0 : index
    %c0_19 = arith.constant 0 : index
    %31 = vector.load %arg4[%c0_18, %c0_19] : memref<16x32xbf16, #tpu.memory_space<vmem>>, vector<16x32xbf16>
    %cst_20 = arith.constant dense<0.000000e+00> : vector<2x32xf32>
    %32 = tpu.matmul %4, %31, %cst_20 {dimension_numbers = #tpu.dot_dimension_numbers<[1], [0], [0], [1], [0, 0, 1, 1], [], []>} : vector<2x16xbf16>, vector<16x32xbf16>, vector<2x32xf32> -> vector<2x32xf32>
    %c2 = arith.constant 2 : index
    %c0_21 = arith.constant 0 : index
    %33 = vector.load %arg6[%c2, %c0_21] : memref<4x32xf32, #tpu.memory_space<vmem>>, vector<1x32xf32>
    %34 = vector.broadcast %33 : vector<1x32xf32> to vector<2x32xf32>
    %35 = arith.addf %32, %34 : vector<2x32xf32>
    %36 = arith.mulf %15, %30 : vector<2x32xf32>
    %37 = arith.addf %35, %36 : vector<2x32xf32>
    %38 = math.tanh %37 : vector<2x32xf32>
    %cst_22 = arith.constant 1.000000e+00 : f32
    %39 = vector.broadcast %cst_22 : f32 to vector<2x32xf32>
    %40 = arith.subf %39, %25 : vector<2x32xf32>
    %41 = arith.mulf %40, %38 : vector<2x32xf32>
    %42 = arith.mulf %25, %2 : vector<2x32xf32>
    %43 = arith.addf %41, %42 : vector<2x32xf32>
    %c0_23 = arith.constant 0 : index
    %c0_24 = arith.constant 0 : index
    %c0_25 = arith.constant 0 : index
    %44 = vector.load %arg15[%c0_23, %c0_24, %c0_25] : memref<2x2x32xf32, #tpu.memory_space<vmem>>, vector<1x2x32xf32>
    %45 = vector.shape_cast %44 : vector<1x2x32xf32> to vector<2x32xf32>
    %46 = vector.shape_cast %43 : vector<2x32xf32> to vector<1x2x32xf32>
    tpu.vector_store %arg15[%c0_23, %c0_24, %c0_25], %46 {strides = array<i32>} : memref<2x2x32xf32, #tpu.memory_space<vmem>>, vector<1x2x32xf32>,
    %c1_26 = arith.constant 1 : index
    %c0_27 = arith.constant 0 : index
    %c0_28 = arith.constant 0 : index
    %47 = vector.load %arg1[%c1_26, %c0_27, %c0_28] : memref<2x2x32xf32, #tpu.memory_space<vmem>>, vector<1x2x32xf32>
    %48 = vector.shape_cast %47 : vector<1x2x32xf32> to vector<2x32xf32>
    %49 = arith.truncf %48 : vector<2x32xf32> to vector<2x32xbf16>
    %50 = arith.truncf %43 : vector<2x32xf32> to vector<2x32xbf16>
    %51 = tpu.concatenate %50, %49 in 1 : vector<2x32xbf16>, vector<2x32xbf16> -> vector<2x64xbf16>
    %c0_29 = arith.constant 0 : index
    %c0_30 = arith.constant 0 : index
    %52 = vector.load %arg7[%c0_29, %c0_30] : memref<64x32xbf16, #tpu.memory_space<vmem>>, vector<64x32xbf16>
    %cst_31 = arith.constant dense<0.000000e+00> : vector<2x32xf32>
    %53 = tpu.matmul %51, %52, %cst_31 {dimension_numbers = #tpu.dot_dimension_numbers<[1], [0], [0], [1], [0, 0, 1, 1], [], []>} : vector<2x64xbf16>, vector<64x32xbf16>, vector<2x32xf32> -> vector<2x32xf32>
    %c0_32 = arith.constant 0 : index
    %c0_33 = arith.constant 0 : index
    %54 = vector.load %arg11[%c0_32, %c0_33] : memref<4x32xf32, #tpu.memory_space<vmem>>, vector<1x32xf32>
    %55 = vector.broadcast %54 : vector<1x32xf32> to vector<2x32xf32>
    %56 = arith.addf %53, %55 : vector<2x32xf32>
    %57 = arith.negf %56 : vector<2x32xf32>
    %58 = math.exp %57 : vector<2x32xf32>
    %cst_34 = arith.constant 1.000000e+00 : f32
    %59 = vector.broadcast %cst_34 : f32 to vector<2x32xf32>
    %60 = arith.addf %59, %58 : vector<2x32xf32>
    %61 = arith.divf %59, %60 : vector<2x32xf32>
    %c0_35 = arith.constant 0 : index
    %c0_36 = arith.constant 0 : index
    %62 = vector.load %arg8[%c0_35, %c0_36] : memref<64x32xbf16, #tpu.memory_space<vmem>>, vector<64x32xbf16>
    %cst_37 = arith.constant dense<0.000000e+00> : vector<2x32xf32>
    %63 = tpu.matmul %51, %62, %cst_37 {dimension_numbers = #tpu.dot_dimension_numbers<[1], [0], [0], [1], [0, 0, 1, 1], [], []>} : vector<2x64xbf16>, vector<64x32xbf16>, vector<2x32xf32> -> vector<2x32xf32>
    %c1_38 = arith.constant 1 : index
    %c0_39 = arith.constant 0 : index
    %64 = vector.load %arg11[%c1_38, %c0_39] : memref<4x32xf32, #tpu.memory_space<vmem>>, vector<1x32xf32>
    %65 = vector.broadcast %64 : vector<1x32xf32> to vector<2x32xf32>
    %66 = arith.addf %63, %65 : vector<2x32xf32>
    %67 = arith.negf %66 : vector<2x32xf32>
    %68 = math.exp %67 : vector<2x32xf32>
    %cst_40 = arith.constant 1.000000e+00 : f32
    %69 = vector.broadcast %cst_40 : f32 to vector<2x32xf32>
    %70 = arith.addf %69, %68 : vector<2x32xf32>
    %71 = arith.divf %69, %70 : vector<2x32xf32>
    %c0_41 = arith.constant 0 : index
    %c0_42 = arith.constant 0 : index
    %72 = vector.load %arg10[%c0_41, %c0_42] : memref<32x32xbf16, #tpu.memory_space<vmem>>, vector<32x32xbf16>
    %cst_43 = arith.constant dense<0.000000e+00> : vector<2x32xf32>
    %73 = tpu.matmul %49, %72, %cst_43 {dimension_numbers = #tpu.dot_dimension_numbers<[1], [0], [0], [1], [0, 0, 1, 1], [], []>} : vector<2x32xbf16>, vector<32x32xbf16>, vector<2x32xf32> -> vector<2x32xf32>
    %c3_44 = arith.constant 3 : index
    %c0_45 = arith.constant 0 : index
    %74 = vector.load %arg11[%c3_44, %c0_45] : memref<4x32xf32, #tpu.memory_space<vmem>>, vector<1x32xf32>
    %75 = vector.broadcast %74 : vector<1x32xf32> to vector<2x32xf32>
    %76 = arith.addf %73, %75 : vector<2x32xf32>
    %c0_46 = arith.constant 0 : index
    %c0_47 = arith.constant 0 : index
    %77 = vector.load %arg9[%c0_46, %c0_47] : memref<32x32xbf16, #tpu.memory_space<vmem>>, vector<32x32xbf16>
    %cst_48 = arith.constant dense<0.000000e+00> : vector<2x32xf32>
    %78 = tpu.matmul %50, %77, %cst_48 {dimension_numbers = #tpu.dot_dimension_numbers<[1], [0], [0], [1], [0, 0, 1, 1], [], []>} : vector<2x32xbf16>, vector<32x32xbf16>, vector<2x32xf32> -> vector<2x32xf32>
    %c2_49 = arith.constant 2 : index
    %c0_50 = arith.constant 0 : index
    %79 = vector.load %arg11[%c2_49, %c0_50] : memref<4x32xf32, #tpu.memory_space<vmem>>, vector<1x32xf32>
    %80 = vector.broadcast %79 : vector<1x32xf32> to vector<2x32xf32>
    %81 = arith.addf %78, %80 : vector<2x32xf32>
    %82 = arith.mulf %61, %76 : vector<2x32xf32>
    %83 = arith.addf %81, %82 : vector<2x32xf32>
    %84 = math.tanh %83 : vector<2x32xf32>
    %cst_51 = arith.constant 1.000000e+00 : f32
    %85 = vector.broadcast %cst_51 : f32 to vector<2x32xf32>
    %86 = arith.subf %85, %71 : vector<2x32xf32>
    %87 = arith.mulf %86, %84 : vector<2x32xf32>
    %88 = arith.mulf %71, %48 : vector<2x32xf32>
    %89 = arith.addf %87, %88 : vector<2x32xf32>
    %c1_52 = arith.constant 1 : index
    %c0_53 = arith.constant 0 : index
    %c0_54 = arith.constant 0 : index
    %90 = vector.load %arg15[%c1_52, %c0_53, %c0_54] : memref<2x2x32xf32, #tpu.memory_space<vmem>>, vector<1x2x32xf32>
    %91 = vector.shape_cast %90 : vector<1x2x32xf32> to vector<2x32xf32>
    %92 = vector.shape_cast %89 : vector<2x32xf32> to vector<1x2x32xf32>
    tpu.vector_store %arg15[%c1_52, %c0_53, %c0_54], %92 {strides = array<i32>} : memref<2x2x32xf32, #tpu.memory_space<vmem>>, vector<1x2x32xf32>,
    %93 = arith.truncf %89 : vector<2x32xf32> to vector<2x32xbf16>
    %c0_55 = arith.constant 0 : index
    %c0_56 = arith.constant 0 : index
    %94 = vector.load %arg12[%c0_55, %c0_56] : memref<32x1xbf16, #tpu.memory_space<vmem>>, vector<32x1xbf16>
    %cst_57 = arith.constant dense<0.000000e+00> : vector<2x1xf32>
    %95 = tpu.matmul %93, %94, %cst_57 {dimension_numbers = #tpu.dot_dimension_numbers<[1], [0], [0], [1], [0, 0, 1, 1], [], []>} : vector<2x32xbf16>, vector<32x1xbf16>, vector<2x1xf32> -> vector<2x1xf32>
    %c0_58 = arith.constant 0 : index
    %c0_59 = arith.constant 0 : index
    %96 = vector.load %arg13[%c0_58, %c0_59] : memref<1x1xf32, #tpu.memory_space<vmem>>, vector<1x1xf32>
    %97 = vector.broadcast %96 : vector<1x1xf32> to vector<2x1xf32>
    %98 = arith.addf %95, %97 : vector<2x1xf32>
    %c0_60 = arith.constant 0 : index
    %c0_61 = arith.constant 0 : index
    %99 = vector.load %arg14[%c0_60, %c0_61] : memref<2x1xf32, #tpu.memory_space<vmem>>, vector<2x1xf32>
    tpu.vector_store %arg14[%c0_60, %c0_61], %98 {strides = array<i32>} : memref<2x1xf32, #tpu.memory_space<vmem>>, vector<2x1xf32>,
    return
  }
}

</mosaic_0001>

<llo_original>
// kernel: gru_decoder_forward.1
$region0: #{gru_decoder_forward.1}
  #allocation0 [shape = 'u32[]', space=smem, size = 0x4, offset = 0x4, fixed_abs, tag = 'smem constant byte address 0x4 - core index']
  #allocation1 [shape = 'u32[144,128]{1,0:T(1,128)}', space=vmem, size = 0x12000, scoped, tag = 'internal scratch']
  #allocation2 [shape = 'f32[1,1]{1,0:T(1,128)S(1)}', space=vmem, size = 0x200, scoped, tag = 'scoped memory for gru_decoder_forward.1']
  %s0 = inlined_call_operand.vmem [shape: f32[2,16], index: 0, kind: input, shape index: {}]
  %s1 = inlined_call_operand.vmem [shape: f32[2,2,32], index: 1, kind: input, shape index: {}, may-alias: {1,15}]
  %s2 = inlined_call_operand.vmem [shape: bf16[48,32], index: 2, kind: input, shape index: {}]
  %s3 = inlined_call_operand.vmem [shape: bf16[48,32], index: 3, kind: input, shape index: {}]
  %s4 = inlined_call_operand.vmem [shape: bf16[16,32], index: 4, kind: input, shape index: {}]
  %s5 = inlined_call_operand.vmem [shape: bf16[32,32], index: 5, kind: input, shape index: {}]
  %s6 = inlined_call_operand.vmem [shape: f32[4,32], index: 6, kind: input, shape index: {}]
  %s7 = inlined_call_operand.vmem [shape: bf16[64,32], index: 7, kind: input, shape index: {}]
  %s8 = inlined_call_operand.vmem [shape: bf16[64,32], index: 8, kind: input, shape index: {}]
  %s9 = inlined_call_operand.vmem [shape: bf16[32,32], index: 9, kind: input, shape index: {}]
  %s10 = inlined_call_operand.vmem [shape: bf16[32,32], index: 10, kind: input, shape index: {}]
  %s11 = inlined_call_operand.vmem [shape: f32[4,32], index: 11, kind: input, shape index: {}]
  %s12 = inlined_call_operand.vmem [shape: bf16[32,1], index: 12, kind: input, shape index: {}]
  %s13 = inlined_call_operand.<no memory space> [shape: f32[1,1], index: 13, kind: input, shape index: {}]
  %s14 = inlined_call_operand.vmem [shape: f32[2,1], index: 14, kind: output, shape index: {0}]
  %s15 = inlined_call_operand.vmem [shape: f32[2,2,32], index: 15, kind: output, shape index: {1}, may-alias: {1,15}]
  %16 = xla_tuple %s14, %s15
  %s17 = sld [smem:[#allocation0]]
  $region74: #{gru_decoder_forward.1} parent=0
    _
  %s19 = ssub.s32 1, %s17
  %s20 = scalar_select 0, %s19, %s17
  %v21 = vstv %s13
  %22 = vst [vmem:[#allocation2] sm:$0x1] %v21
  // Predicated region
  $region2: #{gru_decoder_forward.1} parent=0 // pred_check
    _
  $region3: #{gru_decoder_forward.1} parent=0 // pred_check_branch
    %24 = sbr.rel (0) target = $region5
  $region4: #{gru_decoder_forward.1} parent=0 // pred_region
    _
  $region5: #{gru_decoder_forward.1} parent=0 // pred_fallthru
    _
  // Predicated region
  $region6: #{gru_decoder_forward.1} parent=0 // pred_check
    _
  $region7: #{gru_decoder_forward.1} parent=0 // pred_check_branch
    %26 = sbr.rel (0) target = $region9
  $region8: #{gru_decoder_forward.1} parent=0 // pred_region
    _
  $region9: #{gru_decoder_forward.1} parent=0 // pred_fallthru
    _
  // Predicated region
  $region10: #{gru_decoder_forward.1} parent=0 // pred_check
    _
  $region11: #{gru_decoder_forward.1} parent=0 // pred_check_branch
    %28 = sbr.rel (0) target = $region13
  $region12: #{gru_decoder_forward.1} parent=0 // pred_region
    _
  $region13: #{gru_decoder_forward.1} parent=0 // pred_fallthru
    _
  // Predicated region
  $region14: #{gru_decoder_forward.1} parent=0 // pred_check
    _
  $region15: #{gru_decoder_forward.1} parent=0 // pred_check_branch
    %30 = sbr.rel (0) target = $region17
  $region16: #{gru_decoder_forward.1} parent=0 // pred_region
    _
  $region17: #{gru_decoder_forward.1} parent=0 // pred_fallthru
    _
  // Predicated region
  $region18: #{gru_decoder_forward.1} parent=0 // pred_check
    _
  $region19: #{gru_decoder_forward.1} parent=0 // pred_check_branch
    %32 = sbr.rel (0) target = $region21
  $region20: #{gru_decoder_forward.1} parent=0 // pred_region
    _
  $region21: #{gru_decoder_forward.1} parent=0 // pred_fallthru
    _
  // Predicated region
  $region22: #{gru_decoder_forward.1} parent=0 // pred_check
    _
  $region23: #{gru_decoder_forward.1} parent=0 // pred_check_branch
    %34 = sbr.rel (0) target = $region25
  $region24: #{gru_decoder_forward.1} parent=0 // pred_region
    _
  $region25: #{gru_decoder_forward.1} parent=0 // pred_fallthru
    _
  // Predicated region
  $region26: #{gru_decoder_forward.1} parent=0 // pred_check
    _
  $region27: #{gru_decoder_forward.1} parent=0 // pred_check_branch
    %36 = sbr.rel (0) target = $region29
  $region28: #{gru_decoder_forward.1} parent=0 // pred_region
    _
  $region29: #{gru_decoder_forward.1} parent=0 // pred_fallthru
    _
  // Predicated region
  $region30: #{gru_decoder_forward.1} parent=0 // pred_check
    _
  $region31: #{gru_decoder_forward.1} parent=0 // pred_check_branch
    %38 = sbr.rel (0) target = $region33
  $region32: #{gru_decoder_forward.1} parent=0 // pred_region
    _
  $region33: #{gru_decoder_forward.1} parent=0 // pred_fallthru
    _
  // Predicated region
  $region34: #{gru_decoder_forward.1} parent=0 // pred_check
    _
  $region35: #{gru_decoder_forward.1} parent=0 // pred_check_branch
    %40 = sbr.rel (0) target = $region37
  $region36: #{gru_decoder_forward.1} parent=0 // pred_region
    _
  $region37: #{gru_decoder_forward.1} parent=0 // pred_fallthru
    _
  // Predicated region
  $region38: #{gru_decoder_forward.1} parent=0 // pred_check
    _
  $region39: #{gru_decoder_forward.1} parent=0 // pred_check_branch
    %42 = sbr.rel (0) target = $region41
  $region40: #{gru_decoder_forward.1} parent=0 // pred_region
    _
  $region41: #{gru_decoder_forward.1} parent=0 // pred_fallthru
    _
  // Predicated region
  $region42: #{gru_decoder_forward.1} parent=0 // pred_check
    _
  $region43: #{gru_decoder_forward.1} parent=0 // pred_check_branch
    %44 = sbr.rel (0) target = $region45
  $region44: #{gru_decoder_forward.1} parent=0 // pred_region
    _
  $region45: #{gru_decoder_forward.1} parent=0 // pred_fallthru
    _
  // Predicated region
  $region46: #{gru_decoder_forward.1} parent=0 // pred_check
    _
  $region47: #{gru_decoder_forward.1} parent=0 // pred_check_branch
    %46 = sbr.rel (0) target = $region49
  $region48: #{gru_decoder_forward.1} parent=0 // pred_region
    _
  $region49: #{gru_decoder_forward.1} parent=0 // pred_fallthru
    _
  // Predicated region
  $region50: #{gru_decoder_forward.1} parent=0 // pred_check
    _
  $region51: #{gru_decoder_forward.1} parent=0 // pred_check_branch
    %48 = sbr.rel (0) target = $region53
  $region52: #{gru_decoder_forward.1} parent=0 // pred_region
    _
  $region53: #{gru_decoder_forward.1} parent=0 // pred_fallthru
    _
  // Predicated region
  $region54: #{gru_decoder_forward.1} parent=0 // pred_check
    _
  $region55: #{gru_decoder_forward.1} parent=0 // pred_check_branch
    %50 = sbr.rel (0) target = $region57
  $region56: #{gru_decoder_forward.1} parent=0 // pred_region
    _
  $region57: #{gru_decoder_forward.1} parent=0 // pred_fallthru
    _
  %v52 = vld [vmem:[%s0] sm:$0x3]
  %v53 = vld [vmem:[%s1] sm:$0x3]
  %v54 = vpack.c.bf16 %v53, %v53
  %v55 = vpack.c.bf16 %v52, %v52
  %57 = vrot.lane.b32.xlu0 %v54, 16
  %v58 = vpop.permute.xlu0 %57
  %vm59 = vcmask 130048
  %v62 = vsel %vm59, %v55, %v58
  %v63 = vld [vmem:[%s2] sm:$0xf]
  %v64 = vld [vmem:[%s2 + $0x4] sm:$0xf]
  %v65 = vld [vmem:[%s2 + $0x8] sm:$0xf]
  %v66 = vld [vmem:[%s2 + $0xc] sm:$0xf]
  %v67 = vld [vmem:[%s2 + $0x10] sm:$0xf]
  %v68 = vld [vmem:[%s2 + $0x14] sm:$0xf]
  %v69 = vld [vmem:[%s6] sm:$0x1]
  %v70 = vlaneseq
  %v71 = vshrl.u32 %v70, 7
  %v72 = vsub.s32 0, %v71
  %v73 = vrot.slane %v69, %v72
  %v80 = vunpack.c.l.b16 %v63
  %v81 = vunpack.c.l.b16 %v64
  %v82 = vunpack.c.l.b16 %v65
  %v83 = vunpack.c.l.b16 %v66
  %v84 = vunpack.c.l.b16 %v67
  %v85 = vunpack.c.l.b16 %v68
  %v86 = vpack.c.b16 %v81, %v80
  %v87 = vpack.c.b16 %v83, %v82
  %v88 = vpack.c.b16 %v85, %v84
  %vm92 = vcmask 392192
  %v93 = vsel %vm92, %v62, 0
  %95 = vmatprep.subr.bf16.mxu0 0
  %96 = vmatpush1.bf16.msra.mxu0 %v86
  %97 = vmatprep.subr.bf16.mxu0 0
  %98 = vmatpush1.bf16.msra.mxu0 %v87
  %99 = vmatprep.subr.bf16.mxu0 0
  %100 = vmatpush1.bf16.msra.mxu0 %v88
  %101 = vmatprep.subr.bf16.mxu0 0
  %102 = vmatpush1.bf16.msra.mxu0 0
  %103 = vmatprep.subr.bf16.mxu0 0
  %104 = vmatpush1.bf16.msra.mxu0 0
  %105 = vmatprep.subr.bf16.mxu0 0
  %106 = vmatpush1.bf16.msra.mxu0 0
  %107 = vmatprep.subr.bf16.mxu0 0
  %108 = vmatpush1.bf16.msra.mxu0 0
  %109 = vmatprep.subr.bf16.mxu0 0
  %110 = vmatpush1.bf16.msra.mxu0 0
  %111 = vmatprep.subr.bf16.mxu0 0
  %112 = vmatpush1.bf16.msra.mxu0 0
  %113 = vmatprep.subr.bf16.mxu0 0
  %114 = vmatpush1.bf16.msra.mxu0 0
  %115 = vmatprep.subr.bf16.mxu0 0
  %116 = vmatpush1.bf16.msra.mxu0 0
  %117 = vmatprep.subr.bf16.mxu0 0
  %118 = vmatpush1.bf16.msra.mxu0 0
  %119 = vmatprep.subr.bf16.mxu0 0
  %120 = vmatpush1.bf16.msra.mxu0 0
  %121 = vmatprep.subr.bf16.mxu0 0
  %122 = vmatpush1.bf16.msra.mxu0 0
  %123 = vmatprep.subr.bf16.mxu0 0
  %124 = vmatpush1.bf16.msra.mxu0 0
  %125 = vmatprep.subr.bf16.mxu0 0
  %126 = vmatpush1.bf16.msra.mxu0 0
  %127 = vmatprep.mubr.bf16.mxu0 0
  %128 = vmatmul.mubr.bf16.gmra.mrb[0].mxu0 %v93
  %v129 = vpop.f32.mrb[0].mxu0
  %v130 = vadd.f32 %v73, %v129
  %v131 = vpop.f32.mrb[0].mxu0
  %v132 = vpop.f32.mrb[0].mxu0
  %v133 = vpop.f32.mrb[0].mxu0
  %134 = vdwg.mxu0
  %v135 = vxor.u32 %v130, 2147483648
  %v136 = vmul.f32 %v135, 1.442695
  %v137 = vpow.pop %v136
  %v138 = vadd.f32 %v137, 1.0
  %v139 = vrcp.pop %v138
  %v140 = vmul.f32 1.0, %v139
  %v141 = vld [vmem:[%s3] sm:$0xf]
  %v142 = vld [vmem:[%s3 + $0x4] sm:$0xf]
  %v143 = vld [vmem:[%s3 + $0x8] sm:$0xf]
  %v144 = vld [vmem:[%s3 + $0xc] sm:$0xf]
  %v145 = vld [vmem:[%s3 + $0x10] sm:$0xf]
  %v146 = vld [vmem:[%s3 + $0x14] sm:$0xf]
  %v147 = vld [vmem:[%s6 + $0x1] sm:$0x1]
  %v148 = vlaneseq
  %v149 = vshrl.u32 %v148, 7
  %v150 = vsub.s32 0, %v149
  %v151 = vrot.slane %v147, %v150
  %v158 = vunpack.c.l.b16 %v141
  %v159 = vunpack.c.l.b16 %v142
  %v160 = vunpack.c.l.b16 %v143
  %v161 = vunpack.c.l.b16 %v144
  %v162 = vunpack.c.l.b16 %v145
  %v163 = vunpack.c.l.b16 %v146
  %v164 = vpack.c.b16 %v159, %v158
  %v165 = vpack.c.b16 %v161, %v160
  %v166 = vpack.c.b16 %v163, %v162
  %170 = vmatprep.subr.bf16.mxu0 0
  %171 = vmatpush1.bf16.msra.mxu0 %v164
  %172 = vmatprep.subr.bf16.mxu0 0
  %173 = vmatpush1.bf16.msra.mxu0 %v165
  %174 = vmatprep.subr.bf16.mxu0 0
  %175 = vmatpush1.bf16.msra.mxu0 %v166
  %176 = vmatprep.subr.bf16.mxu0 0
  %177 = vmatpush1.bf16.msra.mxu0 0
  %178 = vmatprep.subr.bf16.mxu0 0
  %179 = vmatpush1.bf16.msra.mxu0 0
  %180 = vmatprep.subr.bf16.mxu0 0
  %181 = vmatpush1.bf16.msra.mxu0 0
  %182 = vmatprep.subr.bf16.mxu0 0
  %183 = vmatpush1.bf16.msra.mxu0 0
  %184 = vmatprep.subr.bf16.mxu0 0
  %185 = vmatpush1.bf16.msra.mxu0 0
  %186 = vmatprep.subr.bf16.mxu0 0
  %187 = vmatpush1.bf16.msra.mxu0 0
  %188 = vmatprep.subr.bf16.mxu0 0
  %189 = vmatpush1.bf16.msra.mxu0 0
  %190 = vmatprep.subr.bf16.mxu0 0
  %191 = vmatpush1.bf16.msra.mxu0 0
  %192 = vmatprep.subr.bf16.mxu0 0
  %193 = vmatpush1.bf16.msra.mxu0 0
  %194 = vmatprep.subr.bf16.mxu0 0
  %195 = vmatpush1.bf16.msra.mxu0 0
  %196 = vmatprep.subr.bf16.mxu0 0
  %197 = vmatpush1.bf16.msra.mxu0 0
  %198 = vmatprep.subr.bf16.mxu0 0
  %199 = vmatpush1.bf16.msra.mxu0 0
  %200 = vmatprep.subr.bf16.mxu0 0
  %201 = vmatpush1.bf16.msra.mxu0 0
  %202 = vmatprep.mubr.bf16.mxu0 0
  %203 = vmatmul.mubr.bf16.gmra.mrb[0].mxu0 %v93
  %v204 = vpop.f32.mrb[0].mxu0
  %v205 = vadd.f32 %v151, %v204
  %v206 = vpop.f32.mrb[0].mxu0
  %v207 = vpop.f32.mrb[0].mxu0
  %v208 = vpop.f32.mrb[0].mxu0
  %209 = vdwg.mxu0
  %v210 = vxor.u32 %v205, 2147483648
  %v211 = vmul.f32 %v210, 1.442695
  %v212 = vpow.pop %v211
  %v213 = vadd.f32 %v212, 1.0
  %v214 = vrcp.pop %v213
  %v215 = vmul.f32 1.0, %v214
  %v216 = vld [vmem:[%s5] sm:$0xf]
  %v217 = vld [vmem:[%s5 + $0x4] sm:$0xf]
  %v218 = vld [vmem:[%s5 + $0x8] sm:$0xf]
  %v219 = vld [vmem:[%s5 + $0xc] sm:$0xf]
  %v220 = vld [vmem:[%s6 + $0x3] sm:$0x1]
  %v221 = vlaneseq
  %v222 = vshrl.u32 %v221, 7
  %v223 = vsub.s32 0, %v222
  %v224 = vrot.slane %v220, %v223
  %v229 = vunpack.c.l.b16 %v216
  %v230 = vunpack.c.l.b16 %v217
  %v231 = vunpack.c.l.b16 %v218
  %v232 = vunpack.c.l.b16 %v219
  %v233 = vpack.c.b16 %v230, %v229
  %v234 = vpack.c.b16 %v232, %v231
  %vm237 = vcmask 261120
  %v239 = vsel %vm237, %v54, 0
  %241 = vmatprep.subr.bf16.mxu0 0
  %242 = vmatpush1.bf16.msra.mxu0 %v233
  %243 = vmatprep.subr.bf16.mxu0 0
  %244 = vmatpush1.bf16.msra.mxu0 %v234
  %245 = vmatprep.subr.bf16.mxu0 0
  %246 = vmatpush1.bf16.msra.mxu0 0
  %247 = vmatprep.subr.bf16.mxu0 0
  %248 = vmatpush1.bf16.msra.mxu0 0
  %249 = vmatprep.subr.bf16.mxu0 0
  %250 = vmatpush1.bf16.msra.mxu0 0
  %251 = vmatprep.subr.bf16.mxu0 0
  %252 = vmatpush1.bf16.msra.mxu0 0
  %253 = vmatprep.subr.bf16.mxu0 0
  %254 = vmatpush1.bf16.msra.mxu0 0
  %255 = vmatprep.subr.bf16.mxu0 0
  %256 = vmatpush1.bf16.msra.mxu0 0
  %257 = vmatprep.subr.bf16.mxu0 0
  %258 = vmatpush1.bf16.msra.mxu0 0
  %259 = vmatprep.subr.bf16.mxu0 0
  %260 = vmatpush1.bf16.msra.mxu0 0
  %261 = vmatprep.subr.bf16.mxu0 0
  %262 = vmatpush1.bf16.msra.mxu0 0
  %263 = vmatprep.subr.bf16.mxu0 0
  %264 = vmatpush1.bf16.msra.mxu0 0
  %265 = vmatprep.subr.bf16.mxu0 0
  %266 = vmatpush1.bf16.msra.mxu0 0
  %267 = vmatprep.subr.bf16.mxu0 0
  %268 = vmatpush1.bf16.msra.mxu0 0
  %269 = vmatprep.subr.bf16.mxu0 0
  %270 = vmatpush1.bf16.msra.mxu0 0
  %271 = vmatprep.subr.bf16.mxu0 0
  %272 = vmatpush1.bf16.msra.mxu0 0
  %273 = vmatprep.mubr.bf16.mxu0 0
  %274 = vmatmul.mubr.bf16.gmra.mrb[0].mxu0 %v239
  %v275 = vpop.f32.mrb[0].mxu0
  %v276 = vadd.f32 %v224, %v275
  %v277 = vpop.f32.mrb[0].mxu0
  %v278 = vpop.f32.mrb[0].mxu0
  %v279 = vpop.f32.mrb[0].mxu0
  %280 = vdwg.mxu0
  %v281 = vld [vmem:[%s4] sm:$0xf]
  %v282 = vld [vmem:[%s4 + $0x4] sm:$0xf]
  %v283 = vld [vmem:[%s6 + $0x2] sm:$0x1]
  %v284 = vlaneseq
  %v285 = vshrl.u32 %v284, 7
  %v286 = vsub.s32 0, %v285
  %v287 = vrot.slane %v283, %v286
  %v290 = vunpack.c.l.b16 %v281
  %v291 = vunpack.c.l.b16 %v282
  %v292 = vpack.c.b16 %v291, %v290
  %v294 = vsel %vm59, %v55, 0
  %296 = vmatprep.subr.bf16.mxu0 0
  %297 = vmatpush1.bf16.msra.mxu0 %v292
  %298 = vmatprep.subr.bf16.mxu0 0
  %299 = vmatpush1.bf16.msra.mxu0 0
  %300 = vmatprep.subr.bf16.mxu0 0
  %301 = vmatpush1.bf16.msra.mxu0 0
  %302 = vmatprep.subr.bf16.mxu0 0
  %303 = vmatpush1.bf16.msra.mxu0 0
  %304 = vmatprep.subr.bf16.mxu0 0
  %305 = vmatpush1.bf16.msra.mxu0 0
  %306 = vmatprep.subr.bf16.mxu0 0
  %307 = vmatpush1.bf16.msra.mxu0 0
  %308 = vmatprep.subr.bf16.mxu0 0
  %309 = vmatpush1.bf16.msra.mxu0 0
  %310 = vmatprep.subr.bf16.mxu0 0
  %311 = vmatpush1.bf16.msra.mxu0 0
  %312 = vmatprep.subr.bf16.mxu0 0
  %313 = vmatpush1.bf16.msra.mxu0 0
  %314 = vmatprep.subr.bf16.mxu0 0
  %315 = vmatpush1.bf16.msra.mxu0 0
  %316 = vmatprep.subr.bf16.mxu0 0
  %317 = vmatpush1.bf16.msra.mxu0 0
  %318 = vmatprep.subr.bf16.mxu0 0
  %319 = vmatpush1.bf16.msra.mxu0 0
  %320 = vmatprep.subr.bf16.mxu0 0
  %321 = vmatpush1.bf16.msra.mxu0 0
  %322 = vmatprep.subr.bf16.mxu0 0
  %323 = vmatpush1.bf16.msra.mxu0 0
  %324 = vmatprep.subr.bf16.mxu0 0
  %325 = vmatpush1.bf16.msra.mxu0 0
  %326 = vmatprep.subr.bf16.mxu0 0
  %327 = vmatpush1.bf16.msra.mxu0 0
  %328 = vmatprep.mubr.bf16.mxu0 0
  %329 = vmatmul.mubr.bf16.gmra.mrb[0].mxu0 %v294
  %v330 = vpop.f32.mrb[0].mxu0
  %v331 = vadd.f32 %v287, %v330
  %v332 = vpop.f32.mrb[0].mxu0
  %v333 = vpop.f32.mrb[0].mxu0
  %v334 = vpop.f32.mrb[0].mxu0
  %335 = vdwg.mxu0
  %v336 = vmul.f32 %v140, %v276
  %v337 = vadd.f32 %v331, %v336
  %v338 = vtanh.pop %v337
  %v339 = vsub.f32 1.0, %v215
  %v340 = vmul.f32 %v339, %v338
  %v341 = vmul.f32 %v215, %v53
  %v342 = vadd.f32 %v340, %v341
  %vm343 = vcmask 254976
  %344 = vst.msk [vmem:[%s15] sm:$0x3] %vm343, %v342
  %s345 = scalar_lea.vmem %s1, 2
  %v346 = vld [vmem:[%s345] sm:$0x3]
  %v347 = vpack.c.bf16 %v346, %v346
  %v348 = vpack.c.bf16 %v342, %v342
  %350 = vrot.lane.b32.xlu0 %v347, 32
  %v351 = vpop.permute.xlu0 %350
  %v354 = vsel %vm237, %v348, %v351
  %v355 = vld [vmem:[%s7] sm:$0xf]
  %v356 = vld [vmem:[%s7 + $0x4] sm:$0xf]
  %v357 = vld [vmem:[%s7 + $0x8] sm:$0xf]
  %v358 = vld [vmem:[%s7 + $0xc] sm:$0xf]
  %v359 = vld [vmem:[%s7 + $0x10] sm:$0xf]
  %v360 = vld [vmem:[%s7 + $0x14] sm:$0xf]
  %v361 = vld [vmem:[%s7 + $0x18] sm:$0xf]
  %v362 = vld [vmem:[%s7 + $0x1c] sm:$0xf]
  %v363 = vld [vmem:[%s11] sm:$0x1]
  %v364 = vlaneseq
  %v365 = vshrl.u32 %v364, 7
  %v366 = vsub.s32 0, %v365
  %v367 = vrot.slane %v363, %v366
  %v376 = vunpack.c.l.b16 %v355
  %v377 = vunpack.c.l.b16 %v356
  %v378 = vunpack.c.l.b16 %v357
  %v379 = vunpack.c.l.b16 %v358
  %v380 = vunpack.c.l.b16 %v359
  %v381 = vunpack.c.l.b16 %v360
  %v382 = vunpack.c.l.b16 %v361
  %v383 = vunpack.c.l.b16 %v362
  %v384 = vpack.c.b16 %v377, %v376
  %v385 = vpack.c.b16 %v379, %v378
  %v386 = vpack.c.b16 %v381, %v380
  %v387 = vpack.c.b16 %v383, %v382
  %vm392 = vcmask 523264
  %v393 = vsel %vm392, %v354, 0
  %395 = vmatprep.subr.bf16.mxu0 0
  %396 = vmatpush1.bf16.msra.mxu0 %v384
  %397 = vmatprep.subr.bf16.mxu0 0
  %398 = vmatpush1.bf16.msra.mxu0 %v385
  %399 = vmatprep.subr.bf16.mxu0 0
  %400 = vmatpush1.bf16.msra.mxu0 %v386
  %401 = vmatprep.subr.bf16.mxu0 0
  %402 = vmatpush1.bf16.msra.mxu0 %v387
  %403 = vmatprep.subr.bf16.mxu0 0
  %404 = vmatpush1.bf16.msra.mxu0 0
  %405 = vmatprep.subr.bf16.mxu0 0
  %406 = vmatpush1.bf16.msra.mxu0 0
  %407 = vmatprep.subr.bf16.mxu0 0
  %408 = vmatpush1.bf16.msra.mxu0 0
  %409 = vmatprep.subr.bf16.mxu0 0
  %410 = vmatpush1.bf16.msra.mxu0 0
  %411 = vmatprep.subr.bf16.mxu0 0
  %412 = vmatpush1.bf16.msra.mxu0 0
  %413 = vmatprep.subr.bf16.mxu0 0
  %414 = vmatpush1.bf16.msra.mxu0 0
  %415 = vmatprep.subr.bf16.mxu0 0
  %416 = vmatpush1.bf16.msra.mxu0 0
  %417 = vmatprep.subr.bf16.mxu0 0
  %418 = vmatpush1.bf16.msra.mxu0 0
  %419 = vmatprep.subr.bf16.mxu0 0
  %420 = vmatpush1.bf16.msra.mxu0 0
  %421 = vmatprep.subr.bf16.mxu0 0
  %422 = vmatpush1.bf16.msra.mxu0 0
  %423 = vmatprep.subr.bf16.mxu0 0
  %424 = vmatpush1.bf16.msra.mxu0 0
  %425 = vmatprep.subr.bf16.mxu0 0
  %426 = vmatpush1.bf16.msra.mxu0 0
  %427 = vmatprep.mubr.bf16.mxu0 0
  %428 = vmatmul.mubr.bf16.gmra.mrb[0].mxu0 %v393
  %v429 = vpop.f32.mrb[0].mxu0
  %v430 = vadd.f32 %v367, %v429
  %v431 = vpop.f32.mrb[0].mxu0
  %v432 = vpop.f32.mrb[0].mxu0
  %v433 = vpop.f32.mrb[0].mxu0
  %434 = vdwg.mxu0
  %v435 = vxor.u32 %v430, 2147483648
  %v436 = vmul.f32 %v435, 1.442695
  %v437 = vpow.pop %v436
  %v438 = vadd.f32 %v437, 1.0
  %v439 = vrcp.pop %v438
  %v440 = vmul.f32 1.0, %v439
  %v441 = vld [vmem:[%s8] sm:$0xf]
  %v442 = vld [vmem:[%s8 + $0x4] sm:$0xf]
  %v443 = vld [vmem:[%s8 + $0x8] sm:$0xf]
  %v444 = vld [vmem:[%s8 + $0xc] sm:$0xf]
  %v445 = vld [vmem:[%s8 + $0x10] sm:$0xf]
  %v446 = vld [vmem:[%s8 + $0x14] sm:$0xf]
  %v447 = vld [vmem:[%s8 + $0x18] sm:$0xf]
  %v448 = vld [vmem:[%s8 + $0x1c] sm:$0xf]
  %v449 = vld [vmem:[%s11 + $0x1] sm:$0x1]
  %v450 = vlaneseq
  %v451 = vshrl.u32 %v450, 7
  %v452 = vsub.s32 0, %v451
  %v453 = vrot.slane %v449, %v452
  %v462 = vunpack.c.l.b16 %v441
  %v463 = vunpack.c.l.b16 %v442
  %v464 = vunpack.c.l.b16 %v443
  %v465 = vunpack.c.l.b16 %v444
  %v466 = vunpack.c.l.b16 %v445
  %v467 = vunpack.c.l.b16 %v446
  %v468 = vunpack.c.l.b16 %v447
  %v469 = vunpack.c.l.b16 %v448
  %v470 = vpack.c.b16 %v463, %v462
  %v471 = vpack.c.b16 %v465, %v464
  %v472 = vpack.c.b16 %v467, %v466
  %v473 = vpack.c.b16 %v469, %v468
  %478 = vmatprep.subr.bf16.mxu0 0
  %479 = vmatpush1.bf16.msra.mxu0 %v470
  %480 = vmatprep.subr.bf16.mxu0 0
  %481 = vmatpush1.bf16.msra.mxu0 %v471
  %482 = vmatprep.subr.bf16.mxu0 0
  %483 = vmatpush1.bf16.msra.mxu0 %v472
  %484 = vmatprep.subr.bf16.mxu0 0
  %485 = vmatpush1.bf16.msra.mxu0 %v473
  %486 = vmatprep.subr.bf16.mxu0 0
  %487 = vmatpush1.bf16.msra.mxu0 0
  %488 = vmatprep.subr.bf16.mxu0 0
  %489 = vmatpush1.bf16.msra.mxu0 0
  %490 = vmatprep.subr.bf16.mxu0 0
  %491 = vmatpush1.bf16.msra.mxu0 0
  %492 = vmatprep.subr.bf16.mxu0 0
  %493 = vmatpush1.bf16.msra.mxu0 0
  %494 = vmatprep.subr.bf16.mxu0 0
  %495 = vmatpush1.bf16.msra.mxu0 0
  %496 = vmatprep.subr.bf16.mxu0 0
  %497 = vmatpush1.bf16.msra.mxu0 0
  %498 = vmatprep.subr.bf16.mxu0 0
  %499 = vmatpush1.bf16.msra.mxu0 0
  %500 = vmatprep.subr.bf16.mxu0 0
  %501 = vmatpush1.bf16.msra.mxu0 0
  %502 = vmatprep.subr.bf16.mxu0 0
  %503 = vmatpush1.bf16.msra.mxu0 0
  %504 = vmatprep.subr.bf16.mxu0 0
  %505 = vmatpush1.bf16.msra.mxu0 0
  %506 = vmatprep.subr.bf16.mxu0 0
  %507 = vmatpush1.bf16.msra.mxu0 0
  %508 = vmatprep.subr.bf16.mxu0 0
  %509 = vmatpush1.bf16.msra.mxu0 0
  %510 = vmatprep.mubr.bf16.mxu0 0
  %511 = vmatmul.mubr.bf16.gmra.mrb[0].mxu0 %v393
  %v512 = vpop.f32.mrb[0].mxu0
  %v513 = vadd.f32 %v453, %v512
  %v514 = vpop.f32.mrb[0].mxu0
  %v515 = vpop.f32.mrb[0].mxu0
  %v516 = vpop.f32.mrb[0].mxu0
  %517 = vdwg.mxu0
  %v518 = vxor.u32 %v513, 2147483648
  %v519 = vmul.f32 %v518, 1.442695
  %v520 = vpow.pop %v519
  %v521 = vadd.f32 %v520, 1.0
  %v522 = vrcp.pop %v521
  %v523 = vmul.f32 1.0, %v522
  %v524 = vld [vmem:[%s10] sm:$0xf]
  %v525 = vld [vmem:[%s10 + $0x4] sm:$0xf]
  %v526 = vld [vmem:[%s10 + $0x8] sm:$0xf]
  %v527 = vld [vmem:[%s10 + $0xc] sm:$0xf]
  %v528 = vld [vmem:[%s11 + $0x3] sm:$0x1]
  %v529 = vlaneseq
  %v530 = vshrl.u32 %v529, 7
  %v531 = vsub.s32 0, %v530
  %v532 = vrot.slane %v528, %v531
  %v537 = vunpack.c.l.b16 %v524
  %v538 = vunpack.c.l.b16 %v525
  %v539 = vunpack.c.l.b16 %v526
  %v540 = vunpack.c.l.b16 %v527
  %v541 = vpack.c.b16 %v538, %v537
  %v542 = vpack.c.b16 %v540, %v539
  %v546 = vsel %vm237, %v347, 0
  %548 = vmatprep.subr.bf16.mxu0 0
  %549 = vmatpush1.bf16.msra.mxu0 %v541
  %550 = vmatprep.subr.bf16.mxu0 0
  %551 = vmatpush1.bf16.msra.mxu0 %v542
  %552 = vmatprep.subr.bf16.mxu0 0
  %553 = vmatpush1.bf16.msra.mxu0 0
  %554 = vmatprep.subr.bf16.mxu0 0
  %555 = vmatpush1.bf16.msra.mxu0 0
  %556 = vmatprep.subr.bf16.mxu0 0
  %557 = vmatpush1.bf16.msra.mxu0 0
  %558 = vmatprep.subr.bf16.mxu0 0
  %559 = vmatpush1.bf16.msra.mxu0 0
  %560 = vmatprep.subr.bf16.mxu0 0
  %561 = vmatpush1.bf16.msra.mxu0 0
  %562 = vmatprep.subr.bf16.mxu0 0
  %563 = vmatpush1.bf16.msra.mxu0 0
  %564 = vmatprep.subr.bf16.mxu0 0
  %565 = vmatpush1.bf16.msra.mxu0 0
  %566 = vmatprep.subr.bf16.mxu0 0
  %567 = vmatpush1.bf16.msra.mxu0 0
  %568 = vmatprep.subr.bf16.mxu0 0
  %569 = vmatpush1.bf16.msra.mxu0 0
  %570 = vmatprep.subr.bf16.mxu0 0
  %571 = vmatpush1.bf16.msra.mxu0 0
  %572 = vmatprep.subr.bf16.mxu0 0
  %573 = vmatpush1.bf16.msra.mxu0 0
  %574 = vmatprep.subr.bf16.mxu0 0
  %575 = vmatpush1.bf16.msra.mxu0 0
  %576 = vmatprep.subr.bf16.mxu0 0
  %577 = vmatpush1.bf16.msra.mxu0 0
  %578 = vmatprep.subr.bf16.mxu0 0
  %579 = vmatpush1.bf16.msra.mxu0 0
  %580 = vmatprep.mubr.bf16.mxu0 0
  %581 = vmatmul.mubr.bf16.gmra.mrb[0].mxu0 %v546
  %v582 = vpop.f32.mrb[0].mxu0
  %v583 = vadd.f32 %v532, %v582
  %v584 = vpop.f32.mrb[0].mxu0
  %v585 = vpop.f32.mrb[0].mxu0
  %v586 = vpop.f32.mrb[0].mxu0
  %587 = vdwg.mxu0
  %v588 = vld [vmem:[%s9] sm:$0xf]
  %v589 = vld [vmem:[%s9 + $0x4] sm:$0xf]
  %v590 = vld [vmem:[%s9 + $0x8] sm:$0xf]
  %v591 = vld [vmem:[%s9 + $0xc] sm:$0xf]
  %v592 = vld [vmem:[%s11 + $0x2] sm:$0x1]
  %v593 = vlaneseq
  %v594 = vshrl.u32 %v593, 7
  %v595 = vsub.s32 0, %v594
  %v596 = vrot.slane %v592, %v595
  %v601 = vunpack.c.l.b16 %v588
  %v602 = vunpack.c.l.b16 %v589
  %v603 = vunpack.c.l.b16 %v590
  %v604 = vunpack.c.l.b16 %v591
  %v605 = vpack.c.b16 %v602, %v601
  %v606 = vpack.c.b16 %v604, %v603
  %v609 = vsel %vm237, %v348, 0
  %611 = vmatprep.subr.bf16.mxu0 0
  %612 = vmatpush1.bf16.msra.mxu0 %v605
  %613 = vmatprep.subr.bf16.mxu0 0
  %614 = vmatpush1.bf16.msra.mxu0 %v606
  %615 = vmatprep.subr.bf16.mxu0 0
  %616 = vmatpush1.bf16.msra.mxu0 0
  %617 = vmatprep.subr.bf16.mxu0 0
  %618 = vmatpush1.bf16.msra.mxu0 0
  %619 = vmatprep.subr.bf16.mxu0 0
  %620 = vmatpush1.bf16.msra.mxu0 0
  %621 = vmatprep.subr.bf16.mxu0 0
  %622 = vmatpush1.bf16.msra.mxu0 0
  %623 = vmatprep.subr.bf16.mxu0 0
  %624 = vmatpush1.bf16.msra.mxu0 0
  %625 = vmatprep.subr.bf16.mxu0 0
  %626 = vmatpush1.bf16.msra.mxu0 0
  %627 = vmatprep.subr.bf16.mxu0 0
  %628 = vmatpush1.bf16.msra.mxu0 0
  %629 = vmatprep.subr.bf16.mxu0 0
  %630 = vmatpush1.bf16.msra.mxu0 0
  %631 = vmatprep.subr.bf16.mxu0 0
  %632 = vmatpush1.bf16.msra.mxu0 0
  %633 = vmatprep.subr.bf16.mxu0 0
  %634 = vmatpush1.bf16.msra.mxu0 0
  %635 = vmatprep.subr.bf16.mxu0 0
  %636 = vmatpush1.bf16.msra.mxu0 0
  %637 = vmatprep.subr.bf16.mxu0 0
  %638 = vmatpush1.bf16.msra.mxu0 0
  %639 = vmatprep.subr.bf16.mxu0 0
  %640 = vmatpush1.bf16.msra.mxu0 0
  %641 = vmatprep.subr.bf16.mxu0 0
  %642 = vmatpush1.bf16.msra.mxu0 0
  %643 = vmatprep.mubr.bf16.mxu0 0
  %644 = vmatmul.mubr.bf16.gmra.mrb[0].mxu0 %v609
  %v645 = vpop.f32.mrb[0].mxu0
  %v646 = vadd.f32 %v596, %v645
  %v647 = vpop.f32.mrb[0].mxu0
  %v648 = vpop.f32.mrb[0].mxu0
  %v649 = vpop.f32.mrb[0].mxu0
  %650 = vdwg.mxu0
  %v651 = vmul.f32 %v440, %v583
  %v652 = vadd.f32 %v646, %v651
  %v653 = vtanh.pop %v652
  %v654 = vsub.f32 1.0, %v523
  %v655 = vmul.f32 %v654, %v653
  %v656 = vmul.f32 %v523, %v346
  %v657 = vadd.f32 %v655, %v656
  %s658 = scalar_lea.vmem %s15, 2
  %659 = vst.msk [vmem:[%s658] sm:$0x3] %vm343, %v657
  %v660 = vpack.c.bf16 %v657, %v657
  %v661 = vld [vmem:[%s12] sm:$0xf]
  %v662 = vld [vmem:[%s12 + $0x4] sm:$0xf]
  %v663 = vld [vmem:[%s12 + $0x8] sm:$0xf]
  %v664 = vld [vmem:[%s12 + $0xc] sm:$0xf]
  %v665 = vld [vmem:[#allocation2] sm:$0x1]
  %v667 = vlaneseq
  %v668 = vshrl.u32 %v667, 7
  %v669 = vsub.s32 0, %v668
  %v670 = vrot.slane %v665, %v669
  %v676 = vunpack.c.l.b16 %v661
  %v677 = vunpack.c.l.b16 %v662
  %v678 = vunpack.c.l.b16 %v663
  %v679 = vunpack.c.l.b16 %v664
  %v680 = vpack.c.b16 %v677, %v676
  %v681 = vpack.c.b16 %v679, %v678
  %v685 = vsel %vm237, %v660, 0
  %687 = vmatprep.subr.bf16.mxu0 0
  %688 = vmatpush1.bf16.msra.mxu0 %v680
  %689 = vmatprep.subr.bf16.mxu0 0
  %690 = vmatpush1.bf16.msra.mxu0 %v681
  %691 = vmatprep.subr.bf16.mxu0 0
  %692 = vmatpush1.bf16.msra.mxu0 0
  %693 = vmatprep.subr.bf16.mxu0 0
  %694 = vmatpush1.bf16.msra.mxu0 0
  %695 = vmatprep.subr.bf16.mxu0 0
  %696 = vmatpush1.bf16.msra.mxu0 0
  %697 = vmatprep.subr.bf16.mxu0 0
  %698 = vmatpush1.bf16.msra.mxu0 0
  %699 = vmatprep.subr.bf16.mxu0 0
  %700 = vmatpush1.bf16.msra.mxu0 0
  %701 = vmatprep.subr.bf16.mxu0 0
  %702 = vmatpush1.bf16.msra.mxu0 0
  %703 = vmatprep.subr.bf16.mxu0 0
  %704 = vmatpush1.bf16.msra.mxu0 0
  %705 = vmatprep.subr.bf16.mxu0 0
  %706 = vmatpush1.bf16.msra.mxu0 0
  %707 = vmatprep.subr.bf16.mxu0 0
  %708 = vmatpush1.bf16.msra.mxu0 0
  %709 = vmatprep.subr.bf16.mxu0 0
  %710 = vmatpush1.bf16.msra.mxu0 0
  %711 = vmatprep.subr.bf16.mxu0 0
  %712 = vmatpush1.bf16.msra.mxu0 0
  %713 = vmatprep.subr.bf16.mxu0 0
  %714 = vmatpush1.bf16.msra.mxu0 0
  %715 = vmatprep.subr.bf16.mxu0 0
  %716 = vmatpush1.bf16.msra.mxu0 0
  %717 = vmatprep.subr.bf16.mxu0 0
  %718 = vmatpush1.bf16.msra.mxu0 0
  %719 = vmatprep.mubr.bf16.mxu0 0
  %720 = vmatmul.mubr.bf16.gmra.mrb[0].mxu0 %v685
  %v721 = vpop.f32.mrb[0].mxu0
  %v722 = vadd.f32 %v670, %v721
  %v723 = vpop.f32.mrb[0].mxu0
  %v724 = vpop.f32.mrb[0].mxu0
  %v725 = vpop.f32.mrb[0].mxu0
  %726 = vdwg.mxu0
  %vm727 = vcmask 1024
  %728 = vst.msk [vmem:[%s14] sm:$0x3] %vm727, %v722
  // Predicated region
  $region58: #{gru_decoder_forward.1} parent=0 // pred_check
    _
  $region59: #{gru_decoder_forward.1} parent=0 // pred_check_branch
    %730 = sbr.rel (0) target = $region61
  $region60: #{gru_decoder_forward.1} parent=0 // pred_region
    _
  $region61: #{gru_decoder_forward.1} parent=0 // pred_fallthru
    _
  // Predicated region
  $region62: #{gru_decoder_forward.1} parent=0 // pred_check
    _
  $region63: #{gru_decoder_forward.1} parent=0 // pred_check_branch
    %732 = sbr.rel (0) target = $region65
  $region64: #{gru_decoder_forward.1} parent=0 // pred_region
    _
  $region65: #{gru_decoder_forward.1} parent=0 // pred_fallthru
    _
  // Predicated region
  $region66: #{gru_decoder_forward.1} parent=0 // pred_check
    _
  $region67: #{gru_decoder_forward.1} parent=0 // pred_check_branch
    %734 = sbr.rel (0) target = $region69
  $region68: #{gru_decoder_forward.1} parent=0 // pred_region
    _
  $region69: #{gru_decoder_forward.1} parent=0 // pred_fallthru
    _
  // Predicated region
  $region70: #{gru_decoder_forward.1} parent=0 // pred_check
    _
  $region71: #{gru_decoder_forward.1} parent=0 // pred_check_branch
    %736 = sbr.rel (0) target = $region73
  $region72: #{gru_decoder_forward.1} parent=0 // pred_region
    _
  $region73: #{gru_decoder_forward.1} parent=0 // pred_fallthru
    _

</llo_original>
